<compile_context>
chip_gen: v7x
topology: tpu7x:2x2x1
jax: 0.10.0
libtpu: 0.0.40
codegen_flags: <defaults>
</compile_context>

<pallas_src>
import jax
import jax.numpy as jnp
from jax.experimental import pallas as pl
from jax.experimental.pallas import tpu as pltpu


def _round_up(x, m):
    return ((x + m - 1) // m) * m


# -------------------------------------------------------------------------- #
# Kernel A: per-entity gate values   gate_all = sigmoid(theta @ w.T + b)
# -------------------------------------------------------------------------- #
def _project_kernel(theta_ref, w_ref, b_ref, gate_ref):
    # theta_ref: VMEM (TN, Hp) f32 -- one tile of the entity embedding table
    # w_ref:     VMEM (8, Hp)  f32 -- row 0 = linear weight, rows 1..7 zero
    # b_ref:     SMEM (1,)     f32 -- linear bias
    # gate_ref:  VMEM (8, TN)  f32 -- row 0 = sigmoid(theta @ w.T + b), lane-dense
    s = jax.lax.dot_general(
        w_ref[...], theta_ref[...],
        dimension_numbers=(((1,), (1,)), ((), ())),
        preferred_element_type=jnp.float32,
    )                                                   # (8, TN), row 0 useful
    gate_ref[...] = jax.nn.sigmoid(s + b_ref[0])        # full-tile store


# -------------------------------------------------------------------------- #
# Kernel B: gather gate_all[idx] for 1024 queries per grid step (one-hot MXU)
# -------------------------------------------------------------------------- #
def _gather_kernel(idx_ref, gate_ref, o_ref):
    # idx_ref:  VMEM (8, 128) int32 -- 1024 query entity ids for this tile
    # gate_ref: VMEM (8, Np)  f32   -- resident precomputed gates (row 0 valid)
    # o_ref:    VMEM (8, 128) f32   -- gathered gate values, lane-dense
    n_p = gate_ref.shape[1]
    gate_row = gate_ref[0:1, :]                                  # (1, Np)
    idx = idx_ref[...]                                           # (8, 128)
    ent = jax.lax.broadcasted_iota(jnp.int32, (n_p, 128), 0)     # (Np, 128)

    rows = []
    for s in range(8):                      # static unroll: 128 queries each
        sel = (ent == idx[s:s + 1, :]).astype(jnp.float32)       # one-hot (Np,128)
        rows.append(jax.lax.dot_general(
            gate_row, sel,
            dimension_numbers=(((1,), (0,)), ((), ())),
            preferred_element_type=jnp.float32))                 # (1, 128)
    o_ref[...] = jnp.concatenate(rows, axis=0)                   # (8, 128) unmasked
    # TODO(synk): for very large entity tables (Np >~ 16k) chunk the one-hot
    # contraction over Np (or DMA-gather scalars) so sel stays VMEM-friendly.


# -------------------------------------------------------------------------- #
# Wrappers
# -------------------------------------------------------------------------- #
def precompute_entity_gates(gate_theta, w, b, *, table_tile=1024):
    """sigmoid(gate_theta @ w.T + b) for every entity, lane-dense (8, Np) f32.

    In a real model this (and the padding) runs once per parameter update.
    """
    num_e, h = gate_theta.shape
    f32 = jnp.float32

    hp = _round_up(max(h, 1), 128)                       # lane-pad H
    np128 = _round_up(max(num_e, 1), 128)
    tn = min(table_tile, np128)                          # table rows per step
    np_ = _round_up(np128, tn)                           # padded #entities

    theta_p = jnp.pad(gate_theta.astype(f32), ((0, np_ - num_e), (0, hp - h)))
    w_p = jnp.pad(jnp.reshape(w, (1, -1)).astype(f32), ((0, 7), (0, hp - h)))
    b_p = jnp.reshape(jnp.asarray(b, f32), (-1,))[:1]    # (1,) scalar in SMEM

    grid_spec = pltpu.PrefetchScalarGridSpec(
        num_scalar_prefetch=0,
        grid=(np_ // tn,),
        in_specs=[
            pl.BlockSpec((tn, hp), lambda i: (i, 0)),            # streamed table
            pl.BlockSpec((8, hp), lambda i: (0, 0)),             # resident weight
            pl.BlockSpec(memory_space=pltpu.MemorySpace.SMEM),   # bias scalar
        ],
        out_specs=pl.BlockSpec((8, tn), lambda i: (0, i)),
    )
    gate_all = pl.pallas_call(
        _project_kernel,
        out_shape=jax.ShapeDtypeStruct((8, np_), f32),
        grid_spec=grid_spec,
        compiler_params=pltpu.CompilerParams(
            dimension_semantics=("parallel",)),
    )(theta_p, w_p, b_p)
    return gate_all                                      # (8, Np)


def gating_forward(x_idx, gate_theta, w, b, *, query_tile=1024):
    """Returns sigmoid(gate_theta[x_idx] @ w.T + b) with shape (E, 1), float32."""
    E = int(x_idx.shape[0])
    num_e = gate_theta.shape[0]
    f32 = jnp.float32

    gate_all = precompute_entity_gates(gate_theta, w, b)
    np_ = gate_all.shape[1]

    ep = _round_up(max(E, 1), query_tile)                # pad queries to full tiles
    n_tiles = ep // query_tile
    rows = ep // 128                                     # multiple of 8

    # Clamp keeps padded/out-of-range ids inside the table (padding uses row 0;
    # those lanes are sliced away below).
    idx = jnp.clip(jnp.asarray(x_idx, jnp.int32), 0, num_e - 1)
    idx_p = jnp.pad(idx, (0, ep - E)).reshape(rows, 128)

    grid_spec = pltpu.PrefetchScalarGridSpec(
        num_scalar_prefetch=0,
        grid=(n_tiles,),
        in_specs=[
            pl.BlockSpec((8, 128), lambda i: (i, 0)),            # query ids
            pl.BlockSpec((8, np_), lambda i: (0, 0)),            # resident gates
        ],
        out_specs=pl.BlockSpec((8, 128), lambda i: (i, 0)),
    )
    out_tiles = pl.pallas_call(
        _gather_kernel,
        out_shape=jax.ShapeDtypeStruct((rows, 128), f32),
        grid_spec=grid_spec,
        compiler_params=pltpu.CompilerParams(
            dimension_semantics=("parallel",)),
    )(idx_p, gate_all)

    return out_tiles.reshape(-1)[:E].reshape(E, 1)


def _init_params(key, num_e, h_dim):
    k1, k2, k3 = jax.random.split(key, 3)
    # xavier_uniform_ for gate_theta: U(-a, a), a = sqrt(6 / (num_e + h_dim))
    a = (6.0 / (num_e + h_dim)) ** 0.5
    gate_theta = jax.random.uniform(k1, (num_e, h_dim), jnp.float32, -a, a)
    # nn.Linear(h_dim, 1) default init: U(-1/sqrt(h_dim), 1/sqrt(h_dim))
    bound = 1.0 / (h_dim ** 0.5)
    w = jax.random.uniform(k2, (1, h_dim), jnp.float32, -bound, bound)
    b = jax.random.uniform(k3, (1,), jnp.float32, -bound, bound)
    return gate_theta, w, b


if __name__ == "__main__":
    num_e, num_rel, h_dim = 16, 4, 32
    E = 8  # number of queried entities |E|

    key = jax.random.PRNGKey(0)
    kp, kx = jax.random.split(key)
    gate_theta, w, b = _init_params(kp, num_e, h_dim)
    X = jax.random.randint(kx, (E,), 0, num_e, dtype=jnp.int32)
    Y = X  # unused by the forward computation (kept only for signature parity)

    out = gating_forward(X, gate_theta, w, b)
    out = jax.block_until_ready(out)

    # pure-JAX reference of the PyTorch forward
    ref = jax.nn.sigmoid(gate_theta[X] @ w.T + b[0])
    assert out.shape == (E, 1)
    assert jnp.allclose(out, ref, atol=1e-5, rtol=1e-5)

    print("KERNEL_OK")
</pallas_src>

<mosaic_0001>
module attributes {stable_mosaic.version = 11 : i64} {
  func.func @_project_kernel(%arg0: i32, %arg1: memref<128x128xf32, #tpu.memory_space<vmem>>, %arg2: memref<8x128xf32, #tpu.memory_space<vmem>>, %arg3: memref<1xf32, #tpu.memory_space<smem>>, %arg4: memref<8x128xf32, #tpu.memory_space<vmem>>) attributes {dimension_semantics = [#tpu.dimension_semantics<parallel>], iteration_bounds = array<i64: 1>, scalar_prefetch = 0 : i64, scratch_operands = 0 : i64, tpu.core_type = #tpu.core_type<tc>, window_params = [{transform_indices = @transform_0, window_bounds = array<i64: 128, 128>}, {pipeline_mode = #tpu.pipeline_mode<synchronous>, transform_indices = @transform_1, window_bounds = array<i64: 8, 128>}, {transform_indices = @transform_2, window_bounds = array<i64: 1>}, {transform_indices = @transform_3, window_bounds = array<i64: 8, 128>}]} {
    %c0 = arith.constant 0 : index
    %c0_0 = arith.constant 0 : index
    %0 = vector.load %arg2[%c0, %c0_0] : memref<8x128xf32, #tpu.memory_space<vmem>>, vector<8x128xf32>
    %c0_1 = arith.constant 0 : index
    %c0_2 = arith.constant 0 : index
    %1 = vector.load %arg1[%c0_1, %c0_2] : memref<128x128xf32, #tpu.memory_space<vmem>>, vector<128x128xf32>
    %cst = arith.constant dense<0.000000e+00> : vector<8x128xf32>
    %2 = tpu.matmul %0, %1, %cst {dimension_numbers = #tpu.dot_dimension_numbers<[1], [1], [0], [0], [0, 0, 1, 0], [], []>} : vector<8x128xf32>, vector<128x128xf32>, vector<8x128xf32> -> vector<8x128xf32>
    %c0_3 = arith.constant 0 : index
    %3 = memref.load %arg3[%c0_3] : memref<1xf32, #tpu.memory_space<smem>>
    %4 = vector.broadcast %3 : f32 to vector<8x128xf32>
    %5 = arith.addf %2, %4 : vector<8x128xf32>
    %6 = arith.negf %5 : vector<8x128xf32>
    %7 = math.exp %6 : vector<8x128xf32>
    %cst_4 = arith.constant 1.000000e+00 : f32
    %8 = vector.broadcast %cst_4 : f32 to vector<8x128xf32>
    %9 = arith.addf %8, %7 : vector<8x128xf32>
    %10 = arith.divf %8, %9 : vector<8x128xf32>
    %c0_5 = arith.constant 0 : index
    %c0_6 = arith.constant 0 : index
    %11 = vector.load %arg4[%c0_5, %c0_6] : memref<8x128xf32, #tpu.memory_space<vmem>>, vector<8x128xf32>
    tpu.vector_store %arg4[%c0_5, %c0_6], %10 {strides = array<i32>} : memref<8x128xf32, #tpu.memory_space<vmem>>, vector<8x128xf32>,
    return
  }
  func.func @transform_0(%arg0: i32) -> (i32, i32) {
    %c0_i32 = arith.constant 0 : i32
    %c0_i32_0 = arith.constant 0 : i32
    return %arg0, %c0_i32 : i32, i32
  }
  func.func @transform_1(%arg0: i32) -> (i32, i32) {
    %c0_i32 = arith.constant 0 : i32
    %c0_i32_0 = arith.constant 0 : i32
    %c0_i32_1 = arith.constant 0 : i32
    return %c0_i32, %c0_i32_0 : i32, i32
  }
  func.func @transform_2(%arg0: i32) -> i32 {
    %c0_i32 = arith.constant 0 : i32
    %c0_i32_0 = arith.constant 0 : i32
    return %c0_i32 : i32
  }
  func.func @transform_3(%arg0: i32) -> (i32, i32) {
    %c0_i32 = arith.constant 0 : i32
    %c0_i32_0 = arith.constant 0 : i32
    return %c0_i32, %arg0 : i32, i32
  }
}

</mosaic_0001>

<llo_original>
// kernel: tpu_custom_call.1
$region0: #{tpu_custom_call.1}
  #allocation0 [shape = 'u32[]', space=smem, size = 0x4, offset = 0x4, fixed_abs, tag = 'smem constant byte address 0x4 - core index']
  #allocation1 [shape = 'u32[144,128]{1,0:T(1,128)}', space=vmem, size = 0x12000, scoped, tag = 'internal scratch']
  #allocation2 [shape = 'f32[1]{0:T(128)S(6)}', space=smem, size = 0x200, scoped, tag = 'scoped memory for tpu_custom_call.1']
  %s0 = inlined_call_operand.hbm [shape: f32[128,128], index: 0, kind: input, shape index: {}]
  %s1 = inlined_call_operand.hbm [shape: f32[8,128], index: 1, kind: input, shape index: {}]
  %s2 = inlined_call_operand.<no memory space> [shape: f32[1], index: 2, kind: input, shape index: {}]
  %s3 = inlined_call_operand.hbm [shape: f32[8,128], index: 3, kind: output, shape index: {}]
  %s4 = sld [smem:[#allocation0]]
  $region30: #{tpu_custom_call.1} parent=0
    _
  %s6 = ssub.s32 1, %s4
  %s7 = scalar_select 0, %s6, %s4
  %8 = sst [smem:[#allocation2]] %s2
  $region1: #{tpu_custom_call.1} parent=0
    #allocation3 [shape = 'u8[65536]{0}', space=vmem, size = 0x10000, scoped, tag = 'input window, operand 0, single buffered']
    #allocation4 [shape = 's32[1]{0}', space=sflag, size = 0x4, scoped, tag = 'scoped memory for tpu_custom_call.1']
    #allocation5 [shape = 's32[1]{0}', space=sflag, size = 0x4, scoped, tag = 'scoped memory for tpu_custom_call.1']
    #allocation6 [shape = 'u8[4096]{0}', space=vmem, size = 0x1000, scoped, tag = 'input window, operand 1, single buffered']
    #allocation7 [shape = 's32[1]{0}', space=sflag, size = 0x4, scoped, tag = 'scoped memory for tpu_custom_call.1']
    #allocation8 [shape = 'u8[4096]{0}', space=vmem, size = 0x1000, scoped, tag = 'output window, operand 0, single buffered']
    %9 = vsyncpa [#allocation4], 0
    %10 = vsyncpa [#allocation7], 0
    %11 = vsyncpa [#allocation5], 0
    // Predicated region
    $region2: #{tpu_custom_call.1} parent=1 // pred_check
      _
    $region3: #{tpu_custom_call.1} parent=1 // pred_check_branch
      %13 = sbr.rel (0) target = $region5
    $region4: #{tpu_custom_call.1} parent=1 // pred_region
      %s15 = ssub.s32 2048, 2048
      %16 = vsyncadd [#allocation4], %s15
      %s17 = sshll.u32 [#allocation3], 4
      %s18 = int_to_ptr.vmem [resolvable:$true] %s17
      %23 = dma.hbm_to_vmem [thread:$0]  %s0, 2048, %s18, [#allocation4], 128, 128, 8
    $region5: #{tpu_custom_call.1} parent=1 // pred_fallthru
      _
    // Predicated region
    $region6: #{tpu_custom_call.1} parent=1 // pred_check
      _
    $region7: #{tpu_custom_call.1} parent=1 // pred_check_branch
      %25 = sbr.rel (0) target = $region9
    $region8: #{tpu_custom_call.1} parent=1 // pred_region
      %s27 = ssub.s32 128, 128
      %28 = vsyncadd [#allocation7], %s27
      %s30 = sshll.u32 [#allocation6], 4
      %s31 = int_to_ptr.vmem [resolvable:$true] %s30
      %33 = dma.hbm_to_vmem [thread:$0]  %s1, 128, %s31, [#allocation7]
    $region9: #{tpu_custom_call.1} parent=1 // pred_fallthru
      _
    // Predicated region
    $region10: #{tpu_custom_call.1} parent=1 // pred_check
      _
    $region11: #{tpu_custom_call.1} parent=1 // pred_check_branch
      %35 = sbr.rel (0) target = $region13
    $region12: #{tpu_custom_call.1} parent=1 // pred_region
      _
    $region13: #{tpu_custom_call.1} parent=1 // pred_fallthru
      _
    // Predicated region
    $region14: #{tpu_custom_call.1} parent=1 // pred_check
      _
    $region15: #{tpu_custom_call.1} parent=1 // pred_check_branch
      %37 = sbr.rel (0) target = $region17
    $region16: #{tpu_custom_call.1} parent=1 // pred_region
      %38 = dma.done [#allocation4], 2048
    $region17: #{tpu_custom_call.1} parent=1 // pred_fallthru
      _
    // Predicated region
    $region18: #{tpu_custom_call.1} parent=1 // pred_check
      _
    $region19: #{tpu_custom_call.1} parent=1 // pred_check_branch
      %40 = sbr.rel (0) target = $region21
    $region20: #{tpu_custom_call.1} parent=1 // pred_region
      %41 = dma.done [#allocation7], 128
    $region21: #{tpu_custom_call.1} parent=1 // pred_fallthru
      _
    %v42 = vld [vmem:[#allocation6] sm:$0xff]
    %v43 = vld [vmem:[#allocation3] sm:$0xff]
    %v44 = vld [vmem:[#allocation3 + $0x8] sm:$0xff]
    %v45 = vld [vmem:[#allocation3 + $0x10] sm:$0xff]
    %v46 = vld [vmem:[#allocation3 + $0x18] sm:$0xff]
    %v47 = vld [vmem:[#allocation3 + $0x20] sm:$0xff]
    %v48 = vld [vmem:[#allocation3 + $0x28] sm:$0xff]
    %v49 = vld [vmem:[#allocation3 + $0x30] sm:$0xff]
    %v50 = vld [vmem:[#allocation3 + $0x38] sm:$0xff]
    %v51 = vld [vmem:[#allocation3 + $0x40] sm:$0xff]
    %v52 = vld [vmem:[#allocation3 + $0x48] sm:$0xff]
    %v53 = vld [vmem:[#allocation3 + $0x50] sm:$0xff]
    %v54 = vld [vmem:[#allocation3 + $0x58] sm:$0xff]
    %v55 = vld [vmem:[#allocation3 + $0x60] sm:$0xff]
    %v56 = vld [vmem:[#allocation3 + $0x68] sm:$0xff]
    %v57 = vld [vmem:[#allocation3 + $0x70] sm:$0xff]
    %v58 = vld [vmem:[#allocation3 + $0x78] sm:$0xff]
    %s59 = sld [smem:[#allocation2]]
    %v60 = vstv %s59
    %61 = vmatprep.subr.mxu0 0.0
    %62 = vmatpush1.xpose.msra.mxu0 %v43
    %63 = vmatprep.subr.mxu0 0.0
    %64 = vmatpush1.xpose.msra.mxu0 %v44
    %65 = vmatprep.subr.mxu0 0.0
    %66 = vmatpush1.xpose.msra.mxu0 %v45
    %67 = vmatprep.subr.mxu0 0.0
    %68 = vmatpush1.xpose.msra.mxu0 %v46
    %69 = vmatprep.subr.mxu0 0.0
    %70 = vmatpush1.xpose.msra.mxu0 %v47
    %71 = vmatprep.subr.mxu0 0.0
    %72 = vmatpush1.xpose.msra.mxu0 %v48
    %73 = vmatprep.subr.mxu0 0.0
    %74 = vmatpush1.xpose.msra.mxu0 %v49
    %75 = vmatprep.subr.mxu0 0.0
    %76 = vmatpush1.xpose.msra.mxu0 %v50
    %77 = vmatprep.subr.mxu0 0.0
    %78 = vmatpush1.xpose.msra.mxu0 %v51
    %79 = vmatprep.subr.mxu0 0.0
    %80 = vmatpush1.xpose.msra.mxu0 %v52
    %81 = vmatprep.subr.mxu0 0.0
    %82 = vmatpush1.xpose.msra.mxu0 %v53
    %83 = vmatprep.subr.mxu0 0.0
    %84 = vmatpush1.xpose.msra.mxu0 %v54
    %85 = vmatprep.subr.mxu0 0.0
    %86 = vmatpush1.xpose.msra.mxu0 %v55
    %87 = vmatprep.subr.mxu0 0.0
    %88 = vmatpush1.xpose.msra.mxu0 %v56
    %89 = vmatprep.subr.mxu0 0.0
    %90 = vmatpush1.xpose.msra.mxu0 %v57
    %91 = vmatprep.subr.mxu0 0.0
    %92 = vmatpush1.xpose.msra.mxu0 %v58
    %93 = vmatprep.subr.mxu0 0.0
    %94 = vmatpush1.xpose.msra.mxu0 0.0
    %95 = vmatprep.subr.mxu0 0.0
    %96 = vmatpush1.xpose.msra.mxu0 0.0
    %97 = vmatprep.subr.mxu0 0.0
    %98 = vmatpush1.xpose.msra.mxu0 0.0
    %99 = vmatprep.subr.mxu0 0.0
    %100 = vmatpush1.xpose.msra.mxu0 0.0
    %101 = vmatprep.subr.mxu0 0.0
    %102 = vmatpush1.xpose.msra.mxu0 0.0
    %103 = vmatprep.subr.mxu0 0.0
    %104 = vmatpush1.xpose.msra.mxu0 0.0
    %105 = vmatprep.subr.mxu0 0.0
    %106 = vmatpush1.xpose.msra.mxu0 0.0
    %107 = vmatprep.subr.mxu0 0.0
    %108 = vmatpush1.xpose.msra.mxu0 0.0
    %109 = vmatprep.subr.mxu0 0.0
    %110 = vmatpush1.xpose.msra.mxu0 0.0
    %111 = vmatprep.subr.mxu0 0.0
    %112 = vmatpush1.xpose.msra.mxu0 0.0
    %113 = vmatprep.subr.mxu0 0.0
    %114 = vmatpush1.xpose.msra.mxu0 0.0
    %115 = vmatprep.subr.mxu0 0.0
    %116 = vmatpush1.xpose.msra.mxu0 0.0
    %117 = vmatprep.subr.mxu0 0.0
    %118 = vmatpush1.xpose.msra.mxu0 0.0
    %119 = vmatprep.subr.mxu0 0.0
    %120 = vmatpush1.xpose.msra.mxu0 0.0
    %121 = vmatprep.subr.mxu0 0.0
    %122 = vmatpush1.xpose.msra.mxu0 0.0
    %123 = vmatprep.subr.mxu0 0.0
    %124 = vmatpush1.xpose.msra.mxu0 0.0
    %125 = vmatprep.mubr.f32.mxu0 0.0
    %126 = vmatmul.mubr.f32.gmra.mrb[0].mxu0 %v42
    %v127 = vpop.f32.mrb[0].mxu0
    %v128 = vadd.f32 %v60, %v127
    %v129 = vpop.f32.mrb[0].mxu0
    %130 = vdwg.mxu0
    %v131 = vxor.u32 %v128, 2147483648
    %v132 = vmul.f32 %v131, 1.442695
    %v133 = vpow.pop %v132
    %v134 = vadd.f32 %v133, 1.0
    %v135 = vrcp.pop %v134
    %v136 = vmul.f32 1.0, %v135
    %137 = vst [vmem:[#allocation8] sm:$0xff] %v136
    // Predicated region
    $region22: #{tpu_custom_call.1} parent=1 // pred_check
      _
    $region23: #{tpu_custom_call.1} parent=1 // pred_check_branch
      %139 = sbr.rel (0) target = $region25
    $region24: #{tpu_custom_call.1} parent=1 // pred_region
      %s141 = ssub.s32 128, 128
      %142 = vsyncadd [#allocation5], %s141
      %s144 = sshll.u32 [#allocation8], 4
      %s145 = int_to_ptr.vmem [resolvable:$true] %s144
      %147 = dma.vmem_to_hbm [thread:$0]  %s145, 128, %s3, [#allocation5]
    $region25: #{tpu_custom_call.1} parent=1 // pred_fallthru
      _
    // Predicated region
    $region26: #{tpu_custom_call.1} parent=1 // pred_check
      _
    $region27: #{tpu_custom_call.1} parent=1 // pred_check_branch
      %149 = sbr.rel (0) target = $region29
    $region28: #{tpu_custom_call.1} parent=1 // pred_region
      %150 = dma.done [#allocation5], 128
    $region29: #{tpu_custom_call.1} parent=1 // pred_fallthru
      _
    %151 = vsyncpa [#allocation4], 1
    %152 = vsyncpa [#allocation7], 1
    %153 = vsyncpa [#allocation5], 1

</llo_original>
